<compile_context>
chip_gen: v5e
topology: v5e:2x2
jax: 0.10.0
libtpu: 0.0.40
codegen_flags: <defaults>
</compile_context>

<pallas_src>
import functools

import jax
import jax.numpy as jnp
from jax.experimental import pallas as pl
from jax.experimental.pallas import tpu as pltpu


def _rdrop_kernel(pred_ref, pred1_ref, gold_ref, out_ref, acc_ref, *,
                  ignore_index, smoothing, n_rows):
    c = pl.program_id(0)          # chunk (parallel; megacore / 2-TC split on v7x)
    t = pl.program_id(1)          # row-tile within chunk (arbitrary / reduction)
    n_t = pl.num_programs(1)

    @pl.when(t == 0)
    def _init():
        acc_ref[...] = jnp.zeros_like(acc_ref)

    # Native-dtype tiles from HBM; cast to f32 on the VPU inside the kernel.
    p = pred_ref[...].astype(jnp.float32)       # [T, C]
    q = pred1_ref[...].astype(jnp.float32)      # [T, C]
    gold = gold_ref[...]                        # [T, 1] int32
    T, C = p.shape

    # Ragged last tile: rows past the true row count get their logits zeroed so
    # every downstream exp/log stays finite and their KL contribution is exactly 0.
    row0 = (c * n_t + t) * T
    rows = row0 + jax.lax.broadcasted_iota(jnp.int32, (T, 1), 0)
    in_range = rows < n_rows
    p = jnp.where(in_range, p, 0.0)
    q = jnp.where(in_range, q, 0.0)

    # ---- LabelSmoothingLoss (apply_logsoftmax=False), fused form:
    # ce_row = -((1 - s) * p[gold] + (s / C) * sum_c p)
    # (the smoothed-label renormalization is a no-op: the smoothed row sums to 1.)
    cols = jax.lax.broadcasted_iota(jnp.int32, (T, C), 1)
    hit = cols == gold
    w_hit = 1.0 - smoothing
    w_all = smoothing / float(C)
    ce_p_rows = -(w_hit * jnp.sum(jnp.where(hit, p, 0.0), axis=-1, keepdims=True)
                  + w_all * jnp.sum(p, axis=-1, keepdims=True))
    ce_q_rows = -(w_hit * jnp.sum(jnp.where(hit, q, 0.0), axis=-1, keepdims=True)
                  + w_all * jnp.sum(q, axis=-1, keepdims=True))

    valid = jnp.logical_and(gold != ignore_index, in_range).astype(jnp.float32)
    ce_p_sum = jnp.sum(ce_p_rows * valid)
    ce_q_sum = jnp.sum(ce_q_rows * valid)
    n_valid = jnp.sum(valid)

    # ---- symmetric KL (no pad_mask, matches compute_kl_loss):
    #   p_loss + q_loss = sum((softmax(q)-softmax(p)) * (logsoftmax(q)-logsoftmax(p)))
    def softmax_pair(x):
        z = x - jnp.max(x, axis=-1, keepdims=True)
        e = jnp.exp(z)                                   # reused for both outputs
        s = jnp.sum(e, axis=-1, keepdims=True)
        return e * pl.reciprocal(s, approx=True), z - jnp.log(s)

    sp, lp = softmax_pair(p)
    sq, lq = softmax_pair(q)
    kl_sum = jnp.sum((sq - sp) * (lq - lp))

    # Accumulate the four partials in lanes 0..3 of a lane-dense VMEM scratch.
    lane = jax.lax.broadcasted_iota(jnp.int32, acc_ref.shape, 1)
    contrib = (jnp.where(lane == 0, ce_p_sum, 0.0)
               + jnp.where(lane == 1, ce_q_sum, 0.0)
               + jnp.where(lane == 2, n_valid, 0.0)
               + jnp.where(lane == 3, kl_sum, 0.0))
    acc_ref[...] += contrib

    @pl.when(t == n_t - 1)
    def _finalize():
        out_ref[0] = acc_ref[...]     # single unmasked (8,128) store per chunk


def _round_up(x, m):
    return ((x + m - 1) // m) * m


def rdrop_loss(pred, pred1, gold, *, ignore_index, smoothing=0.1,
               reduction="sum", tile_n=None):
    """Forward pass of RDrop_Loss(ignore_index, reduction)(pred, pred1, gold)."""
    assert reduction in ("sum", "mean")
    N, C = pred.shape
    itemsize = jnp.dtype(pred.dtype).itemsize
    gold2d = gold.reshape(N, 1).astype(jnp.int32)

    # Row tile: keep one f32 [tile_n, C] temporary near ~1 MiB so a handful of live
    # temporaries + the 2x2 double-buffered input blocks stay well inside the 32 MiB
    # scoped-VMEM budget we request (safe on v5e / v6e / v7x's 64 MiB VMEM).
    if tile_n is None:
        tile_n = max(8, min(1024, (1 << 20) // max(1, C * 4)))
    tile_n = max(8, _round_up(min(int(tile_n), _round_up(N, 8)), 8))

    total_tiles = -(-N // tile_n)
    # Two chunks (leading "parallel" axis) when the tile count splits evenly, so the
    # two TensorCores on v7x each take half of the rows; harmless loop elsewhere.
    num_chunks = 2 if (total_tiles >= 2 and total_tiles % 2 == 0) else 1
    tiles_per_chunk = total_tiles // num_chunks

    kernel = functools.partial(
        _rdrop_kernel,
        ignore_index=int(ignore_index),
        smoothing=float(smoothing),
        n_rows=N,
    )

    grid_spec = pltpu.PrefetchScalarGridSpec(
        num_scalar_prefetch=0,
        grid=(num_chunks, tiles_per_chunk),
        in_specs=[
            pl.BlockSpec((tile_n, C), lambda c, t: (c * tiles_per_chunk + t, 0)),
            pl.BlockSpec((tile_n, C), lambda c, t: (c * tiles_per_chunk + t, 0)),
            pl.BlockSpec((tile_n, 1), lambda c, t: (c * tiles_per_chunk + t, 0)),
        ],
        out_specs=pl.BlockSpec((1, 8, 128), lambda c, t: (c, 0, 0)),
        scratch_shapes=[pltpu.VMEM((8, 128), jnp.float32)],
    )

    partials = pl.pallas_call(
        kernel,
        out_shape=jax.ShapeDtypeStruct((num_chunks, 8, 128), jnp.float32),
        grid_spec=grid_spec,
        compiler_params=pltpu.CompilerParams(
            dimension_semantics=("parallel", "arbitrary"),
            vmem_limit_bytes=32 * 1024 * 1024,
        ),
        cost_estimate=pl.CostEstimate(
            flops=int(24 * N * C),
            transcendentals=int(2 * N * C + 4 * N),
            bytes_accessed=int(2 * N * C * itemsize + N * 4
                               + num_chunks * 8 * 128 * 4),
        ),
    )(pred, pred1, gold2d)

    # Tiny wrapper-side combine of the per-chunk partial sums.
    sums = jnp.sum(partials[:, 0, 0:4], axis=0)          # [ce_p, ce_q, n_valid, kl]
    ce_p, ce_q, n_valid, kl_raw = sums[0], sums[1], sums[2], sums[3]
    if reduction == "sum":
        ce = 0.5 * (ce_p + ce_q)
    else:
        # NOTE: torch would produce NaN if every token is ignored; we clamp to 1.
        ce = 0.5 * (ce_p + ce_q) / jnp.maximum(n_valid, 1.0)
    # kl_loss = 0.5 * (p_loss + q_loss);  total = ce + 0.5 * kl_loss
    return ce + 0.25 * kl_raw


def _reference_rdrop(pred, pred1, gold, *, ignore_index, smoothing=0.1,
                     reduction="sum"):
    """Pure-JAX mirror of the PyTorch RDrop_Loss forward (for verification)."""
    pred = pred.astype(jnp.float32)
    pred1 = pred1.astype(jnp.float32)
    C = pred.shape[-1]
    keep = gold != ignore_index
    p, q, g = pred[keep], pred1[keep], gold[keep]
    onehot = jax.nn.one_hot(g, C, dtype=jnp.float32)
    sm = onehot * (1.0 - smoothing) + smoothing / float(C)
    sm = sm / sm.sum(-1, keepdims=True)
    ce_p = -(p * sm).sum(-1)
    ce_q = -(q * sm).sum(-1)
    if reduction == "sum":
        ce_p, ce_q = ce_p.sum(), ce_q.sum()
    else:
        ce_p, ce_q = ce_p.mean(), ce_q.mean()
    ce = 0.5 * (ce_p + ce_q)
    lp = jax.nn.log_softmax(pred, axis=-1)
    lq = jax.nn.log_softmax(pred1, axis=-1)
    kl = 0.5 * ((jnp.exp(lq) * (lq - lp)).sum() + (jnp.exp(lp) * (lp - lq)).sum())
    return ce + 0.5 * kl


if __name__ == "__main__":
    key = jax.random.PRNGKey(0)
    k1, k2, k3, k4, k5, k6 = jax.random.split(key, 6)
    IGNORE_INDEX = 0   # padding class id

    # --- small shape matching the module: seq=8 rows, classes=32, f32, 'sum' ----
    N, C = 8, 32
    pred = jax.random.normal(k1, (N, C), dtype=jnp.float32)
    pred1 = jax.random.normal(k2, (N, C), dtype=jnp.float32)
    gold = jax.random.randint(k3, (N,), 0, C, dtype=jnp.int32)

    loss = jax.block_until_ready(
        rdrop_loss(pred, pred1, gold, ignore_index=IGNORE_INDEX, reduction="sum"))
    ref = _reference_rdrop(pred, pred1, gold, ignore_index=IGNORE_INDEX,
                           reduction="sum")
    assert jnp.allclose(loss, ref, rtol=2e-3, atol=2e-3), (loss, ref)

    # --- ragged shape exercising tiling, the parallel chunk split, 'mean' --------
    N2, C2 = 120, 160                      # 8 tiles of 16 rows -> 2 chunks x 4 tiles
    p2 = jax.random.normal(k4, (N2, C2), dtype=jnp.float32)
    q2 = jax.random.normal(k5, (N2, C2), dtype=jnp.float32)
    g2 = jax.random.randint(k6, (N2,), 0, C2, dtype=jnp.int32)

    loss2 = jax.block_until_ready(
        rdrop_loss(p2, q2, g2, ignore_index=IGNORE_INDEX, reduction="mean",
                   tile_n=16))
    ref2 = _reference_rdrop(p2, q2, g2, ignore_index=IGNORE_INDEX, reduction="mean")
    assert jnp.allclose(loss2, ref2, rtol=2e-3, atol=2e-3), (loss2, ref2)

    # --- native bf16 logits fed straight into the kernel (no wrapper upcast) -----
    p2b, q2b = p2.astype(jnp.bfloat16), q2.astype(jnp.bfloat16)
    loss3 = jax.block_until_ready(
        rdrop_loss(p2b, q2b, g2, ignore_index=IGNORE_INDEX, reduction="sum",
                   tile_n=16))
    ref3 = _reference_rdrop(p2b, q2b, g2, ignore_index=IGNORE_INDEX,
                            reduction="sum")
    assert jnp.allclose(loss3, ref3, rtol=5e-3, atol=5e-3), (loss3, ref3)

    print("KERNEL_OK")
</pallas_src>

<mosaic_0001>
module attributes {stable_mosaic.version = 11 : i64} {
  func.func @_rdrop_kernel(%arg0: i32, %arg1: i32, %arg2: memref<8x32xf32, #tpu.memory_space<vmem>>, %arg3: memref<8x32xf32, #tpu.memory_space<vmem>>, %arg4: memref<8x1xi32, #tpu.memory_space<vmem>>, %arg5: memref<1x8x128xf32, #tpu.memory_space<vmem>>, %arg6: memref<8x128xf32, #tpu.memory_space<vmem>>) attributes {dimension_semantics = [#tpu.dimension_semantics<parallel>, #tpu.dimension_semantics<arbitrary>], iteration_bounds = array<i64: 1, 1>, scalar_prefetch = 0 : i64, scratch_operands = 1 : i64, tpu.core_type = #tpu.core_type<tc>, window_params = [{transform_indices = @transform_0, window_bounds = array<i64: 8, 32>}, {transform_indices = @transform_1, window_bounds = array<i64: 8, 32>}, {transform_indices = @transform_2, window_bounds = array<i64: 8, 1>}, {transform_indices = @transform_3, window_bounds = array<i64: 1, 8, 128>}]} {
    %c0_i32 = arith.constant 0 : i32
    %0 = arith.cmpi eq, %arg1, %c0_i32 : i32
    %1 = arith.extui %0 : i1 to i32
    %c0_i32_0 = arith.constant 0 : i32
    %2 = arith.cmpi ne, %1, %c0_i32_0 : i32
    scf.if %2 {
      %cst_41 = arith.constant 0.000000e+00 : f32
      %133 = vector.broadcast %cst_41 : f32 to vector<8x128xf32>
      %c0_42 = arith.constant 0 : index
      %c0_43 = arith.constant 0 : index
      %134 = vector.load %arg6[%c0_42, %c0_43] : memref<8x128xf32, #tpu.memory_space<vmem>>, vector<8x128xf32>
      tpu.vector_store %arg6[%c0_42, %c0_43], %133 {strides = array<i32>} : memref<8x128xf32, #tpu.memory_space<vmem>>, vector<8x128xf32>,
    } else {
    }
    %c0 = arith.constant 0 : index
    %c0_1 = arith.constant 0 : index
    %3 = vector.load %arg2[%c0, %c0_1] : memref<8x32xf32, #tpu.memory_space<vmem>>, vector<8x32xf32>
    %c0_2 = arith.constant 0 : index
    %c0_3 = arith.constant 0 : index
    %4 = vector.load %arg3[%c0_2, %c0_3] : memref<8x32xf32, #tpu.memory_space<vmem>>, vector<8x32xf32>
    %c0_4 = arith.constant 0 : index
    %c0_5 = arith.constant 0 : index
    %5 = vector.load %arg4[%c0_4, %c0_5] : memref<8x1xi32, #tpu.memory_space<vmem>>, vector<8x1xi32>
    %c1_i32 = arith.constant 1 : i32
    %6 = arith.muli %arg0, %c1_i32 : i32
    %7 = arith.addi %6, %arg1 : i32
    %c8_i32 = arith.constant 8 : i32
    %8 = arith.muli %7, %c8_i32 : i32
    %9 = tpu.iota {dimensions = array<i32: 0>} : vector<8x1xi32>
    %10 = vector.broadcast %8 : i32 to vector<8x1xi32>
    %11 = arith.addi %10, %9 : vector<8x1xi32>
    %c8_i32_6 = arith.constant 8 : i32
    %12 = vector.broadcast %c8_i32_6 : i32 to vector<8x1xi32>
    %13 = arith.cmpi slt, %11, %12 : vector<8x1xi32>
    %cst = arith.constant 0.000000e+00 : f32
    %14 = vector.shape_cast %13 : vector<8x1xi1> to vector<8x1xi1>
    %15 = vector.broadcast %14 : vector<8x1xi1> to vector<8x32xi1>
    %16 = vector.broadcast %cst : f32 to vector<8x32xf32>
    %17 = arith.select %15, %3, %16 : vector<8x32xi1>, vector<8x32xf32>
    %cst_7 = arith.constant 0.000000e+00 : f32
    %18 = vector.shape_cast %13 : vector<8x1xi1> to vector<8x1xi1>
    %19 = vector.broadcast %18 : vector<8x1xi1> to vector<8x32xi1>
    %20 = vector.broadcast %cst_7 : f32 to vector<8x32xf32>
    %21 = arith.select %19, %4, %20 : vector<8x32xi1>, vector<8x32xf32>
    %22 = tpu.iota {dimensions = array<i32: 1>} : vector<8x32xi32>
    %23 = vector.broadcast %5 : vector<8x1xi32> to vector<8x32xi32>
    %24 = arith.cmpi eq, %22, %23 : vector<8x32xi32>
    %cst_8 = arith.constant 0.000000e+00 : f32
    %25 = vector.broadcast %cst_8 : f32 to vector<8x32xf32>
    %26 = arith.select %24, %17, %25 : vector<8x32xi1>, vector<8x32xf32>
    %cst_9 = arith.constant dense<0.000000e+00> : vector<8xf32>
    %27 = vector.multi_reduction <add>, %26, %cst_9 [1] : vector<8x32xf32> to vector<8xf32>
    %28 = vector.shape_cast %27 : vector<8xf32> to vector<8x1xf32>
    %cst_10 = arith.constant 0.899999976 : f32
    %29 = vector.broadcast %cst_10 : f32 to vector<8x1xf32>
    %30 = arith.mulf %29, %28 : vector<8x1xf32>
    %cst_11 = arith.constant dense<0.000000e+00> : vector<8xf32>
    %31 = vector.multi_reduction <add>, %17, %cst_11 [1] : vector<8x32xf32> to vector<8xf32>
    %32 = vector.shape_cast %31 : vector<8xf32> to vector<8x1xf32>
    %cst_12 = arith.constant 3.125000e-03 : f32
    %33 = vector.broadcast %cst_12 : f32 to vector<8x1xf32>
    %34 = arith.mulf %33, %32 : vector<8x1xf32>
    %35 = arith.addf %30, %34 : vector<8x1xf32>
    %cst_13 = arith.constant 0.000000e+00 : f32
    %36 = vector.broadcast %cst_13 : f32 to vector<8x1xf32>
    %37 = arith.subf %36, %35 : vector<8x1xf32>
    %cst_14 = arith.constant 0.000000e+00 : f32
    %38 = vector.broadcast %cst_14 : f32 to vector<8x32xf32>
    %39 = arith.select %24, %21, %38 : vector<8x32xi1>, vector<8x32xf32>
    %cst_15 = arith.constant dense<0.000000e+00> : vector<8xf32>
    %40 = vector.multi_reduction <add>, %39, %cst_15 [1] : vector<8x32xf32> to vector<8xf32>
    %41 = vector.shape_cast %40 : vector<8xf32> to vector<8x1xf32>
    %cst_16 = arith.constant 0.899999976 : f32
    %42 = vector.broadcast %cst_16 : f32 to vector<8x1xf32>
    %43 = arith.mulf %42, %41 : vector<8x1xf32>
    %cst_17 = arith.constant dense<0.000000e+00> : vector<8xf32>
    %44 = vector.multi_reduction <add>, %21, %cst_17 [1] : vector<8x32xf32> to vector<8xf32>
    %45 = vector.shape_cast %44 : vector<8xf32> to vector<8x1xf32>
    %cst_18 = arith.constant 3.125000e-03 : f32
    %46 = vector.broadcast %cst_18 : f32 to vector<8x1xf32>
    %47 = arith.mulf %46, %45 : vector<8x1xf32>
    %48 = arith.addf %43, %47 : vector<8x1xf32>
    %cst_19 = arith.constant 0.000000e+00 : f32
    %49 = vector.broadcast %cst_19 : f32 to vector<8x1xf32>
    %50 = arith.subf %49, %48 : vector<8x1xf32>
    %c0_i32_20 = arith.constant 0 : i32
    %51 = vector.broadcast %c0_i32_20 : i32 to vector<8x1xi32>
    %52 = arith.cmpi ne, %5, %51 : vector<8x1xi32>
    %53 = arith.andi %52, %13 : vector<8x1xi1>
    %54 = arith.extui %53 : vector<8x1xi1> to vector<8x1xi32>
    %55 = arith.sitofp %54 : vector<8x1xi32> to vector<8x1xf32>
    %56 = arith.mulf %37, %55 : vector<8x1xf32>
    %57 = vector.shape_cast %56 : vector<8x1xf32> to vector<1x8x1xf32>
    %cst_21 = arith.constant dense<0.000000e+00> : vector<1xf32>
    %58 = vector.multi_reduction <add>, %57, %cst_21 [1, 2] : vector<1x8x1xf32> to vector<1xf32>
    %59 = vector.shape_cast %58 : vector<1xf32> to vector<1x1x1xf32>
    %60 = vector.extract %59[0, 0, 0] : f32 from vector<1x1x1xf32>
    %61 = arith.mulf %50, %55 : vector<8x1xf32>
    %62 = vector.shape_cast %61 : vector<8x1xf32> to vector<1x8x1xf32>
    %cst_22 = arith.constant dense<0.000000e+00> : vector<1xf32>
    %63 = vector.multi_reduction <add>, %62, %cst_22 [1, 2] : vector<1x8x1xf32> to vector<1xf32>
    %64 = vector.shape_cast %63 : vector<1xf32> to vector<1x1x1xf32>
    %65 = vector.extract %64[0, 0, 0] : f32 from vector<1x1x1xf32>
    %66 = vector.shape_cast %55 : vector<8x1xf32> to vector<1x8x1xf32>
    %cst_23 = arith.constant dense<0.000000e+00> : vector<1xf32>
    %67 = vector.multi_reduction <add>, %66, %cst_23 [1, 2] : vector<1x8x1xf32> to vector<1xf32>
    %68 = vector.shape_cast %67 : vector<1xf32> to vector<1x1x1xf32>
    %69 = vector.extract %68[0, 0, 0] : f32 from vector<1x1x1xf32>
    %cst_24 = arith.constant dense<0xFF800000> : vector<8xf32>
    %70 = vector.multi_reduction <maximumf>, %17, %cst_24 [1] : vector<8x32xf32> to vector<8xf32>
    %71 = vector.shape_cast %70 : vector<8xf32> to vector<8x1xf32>
    %72 = vector.broadcast %71 : vector<8x1xf32> to vector<8x32xf32>
    %73 = arith.subf %17, %72 : vector<8x32xf32>
    %74 = math.exp %73 : vector<8x32xf32>
    %cst_25 = arith.constant dense<0.000000e+00> : vector<8xf32>
    %75 = vector.multi_reduction <add>, %74, %cst_25 [1] : vector<8x32xf32> to vector<8xf32>
    %76 = vector.shape_cast %75 : vector<8xf32> to vector<8x1xf32>
    %77 = tpu.reciprocal %76 {approx = true} : vector<8x1xf32> -> vector<8x1xf32>
    %78 = vector.broadcast %77 : vector<8x1xf32> to vector<8x32xf32>
    %79 = arith.mulf %74, %78 : vector<8x32xf32>
    %80 = math.log %76 : vector<8x1xf32>
    %81 = vector.broadcast %80 : vector<8x1xf32> to vector<8x32xf32>
    %82 = arith.subf %73, %81 : vector<8x32xf32>
    %cst_26 = arith.constant dense<0xFF800000> : vector<8xf32>
    %83 = vector.multi_reduction <maximumf>, %21, %cst_26 [1] : vector<8x32xf32> to vector<8xf32>
    %84 = vector.shape_cast %83 : vector<8xf32> to vector<8x1xf32>
    %85 = vector.broadcast %84 : vector<8x1xf32> to vector<8x32xf32>
    %86 = arith.subf %21, %85 : vector<8x32xf32>
    %87 = math.exp %86 : vector<8x32xf32>
    %cst_27 = arith.constant dense<0.000000e+00> : vector<8xf32>
    %88 = vector.multi_reduction <add>, %87, %cst_27 [1] : vector<8x32xf32> to vector<8xf32>
    %89 = vector.shape_cast %88 : vector<8xf32> to vector<8x1xf32>
    %90 = tpu.reciprocal %89 {approx = true} : vector<8x1xf32> -> vector<8x1xf32>
    %91 = vector.broadcast %90 : vector<8x1xf32> to vector<8x32xf32>
    %92 = arith.mulf %87, %91 : vector<8x32xf32>
    %93 = math.log %89 : vector<8x1xf32>
    %94 = vector.broadcast %93 : vector<8x1xf32> to vector<8x32xf32>
    %95 = arith.subf %86, %94 : vector<8x32xf32>
    %96 = arith.subf %92, %79 : vector<8x32xf32>
    %97 = arith.subf %95, %82 : vector<8x32xf32>
    %98 = arith.mulf %96, %97 : vector<8x32xf32>
    %99 = vector.shape_cast %98 : vector<8x32xf32> to vector<1x8x32xf32>
    %cst_28 = arith.constant dense<0.000000e+00> : vector<1xf32>
    %100 = vector.multi_reduction <add>, %99, %cst_28 [1, 2] : vector<1x8x32xf32> to vector<1xf32>
    %101 = vector.shape_cast %100 : vector<1xf32> to vector<1x1x1xf32>
    %102 = vector.extract %101[0, 0, 0] : f32 from vector<1x1x1xf32>
    %103 = tpu.iota {dimensions = array<i32: 1>} : vector<8x128xi32>
    %c0_i32_29 = arith.constant 0 : i32
    %104 = vector.broadcast %c0_i32_29 : i32 to vector<8x128xi32>
    %105 = arith.cmpi eq, %103, %104 : vector<8x128xi32>
    %cst_30 = arith.constant 0.000000e+00 : f32
    %106 = vector.broadcast %60 : f32 to vector<8x128xf32>
    %107 = vector.broadcast %cst_30 : f32 to vector<8x128xf32>
    %108 = arith.select %105, %106, %107 : vector<8x128xi1>, vector<8x128xf32>
    %c1_i32_31 = arith.constant 1 : i32
    %109 = vector.broadcast %c1_i32_31 : i32 to vector<8x128xi32>
    %110 = arith.cmpi eq, %103, %109 : vector<8x128xi32>
    %cst_32 = arith.constant 0.000000e+00 : f32
    %111 = vector.broadcast %65 : f32 to vector<8x128xf32>
    %112 = vector.broadcast %cst_32 : f32 to vector<8x128xf32>
    %113 = arith.select %110, %111, %112 : vector<8x128xi1>, vector<8x128xf32>
    %114 = arith.addf %108, %113 : vector<8x128xf32>
    %c2_i32 = arith.constant 2 : i32
    %115 = vector.broadcast %c2_i32 : i32 to vector<8x128xi32>
    %116 = arith.cmpi eq, %103, %115 : vector<8x128xi32>
    %cst_33 = arith.constant 0.000000e+00 : f32
    %117 = vector.broadcast %69 : f32 to vector<8x128xf32>
    %118 = vector.broadcast %cst_33 : f32 to vector<8x128xf32>
    %119 = arith.select %116, %117, %118 : vector<8x128xi1>, vector<8x128xf32>
    %120 = arith.addf %114, %119 : vector<8x128xf32>
    %c3_i32 = arith.constant 3 : i32
    %121 = vector.broadcast %c3_i32 : i32 to vector<8x128xi32>
    %122 = arith.cmpi eq, %103, %121 : vector<8x128xi32>
    %cst_34 = arith.constant 0.000000e+00 : f32
    %123 = vector.broadcast %102 : f32 to vector<8x128xf32>
    %124 = vector.broadcast %cst_34 : f32 to vector<8x128xf32>
    %125 = arith.select %122, %123, %124 : vector<8x128xi1>, vector<8x128xf32>
    %126 = arith.addf %120, %125 : vector<8x128xf32>
    %c0_35 = arith.constant 0 : index
    %c0_36 = arith.constant 0 : index
    %127 = vector.load %arg6[%c0_35, %c0_36] : memref<8x128xf32, #tpu.memory_space<vmem>>, vector<8x128xf32>
    %128 = arith.addf %127, %126 : vector<8x128xf32>
    %c0_37 = arith.constant 0 : index
    %c0_38 = arith.constant 0 : index
    %129 = vector.load %arg6[%c0_37, %c0_38] : memref<8x128xf32, #tpu.memory_space<vmem>>, vector<8x128xf32>
    tpu.vector_store %arg6[%c0_37, %c0_38], %128 {strides = array<i32>} : memref<8x128xf32, #tpu.memory_space<vmem>>, vector<8x128xf32>,
    %c0_i32_39 = arith.constant 0 : i32
    %130 = arith.cmpi eq, %arg1, %c0_i32_39 : i32
    %131 = arith.extui %130 : i1 to i32
    %c0_i32_40 = arith.constant 0 : i32
    %132 = arith.cmpi ne, %131, %c0_i32_40 : i32
    scf.if %132 {
      %c0_41 = arith.constant 0 : index
      %c0_42 = arith.constant 0 : index
      %133 = vector.load %arg6[%c0_41, %c0_42] : memref<8x128xf32, #tpu.memory_space<vmem>>, vector<8x128xf32>
      %c0_43 = arith.constant 0 : index
      %c0_44 = arith.constant 0 : index
      %c0_45 = arith.constant 0 : index
      %134 = vector.load %arg5[%c0_43, %c0_44, %c0_45] : memref<1x8x128xf32, #tpu.memory_space<vmem>>, vector<1x8x128xf32>
      %135 = vector.shape_cast %134 : vector<1x8x128xf32> to vector<8x128xf32>
      %136 = vector.shape_cast %133 : vector<8x128xf32> to vector<1x8x128xf32>
      tpu.vector_store %arg5[%c0_43, %c0_44, %c0_45], %136 {strides = array<i32>} : memref<1x8x128xf32, #tpu.memory_space<vmem>>, vector<1x8x128xf32>,
    } else {
    }
    return
  }
  func.func @transform_0(%arg0: i32, %arg1: i32) -> (i32, i32) {
    %c1_i32 = arith.constant 1 : i32
    %0 = arith.muli %arg0, %c1_i32 : i32
    %1 = arith.addi %0, %arg1 : i32
    %c0_i32 = arith.constant 0 : i32
    %c0_i32_0 = arith.constant 0 : i32
    return %1, %c0_i32 : i32, i32
  }
  func.func @transform_1(%arg0: i32, %arg1: i32) -> (i32, i32) {
    %c1_i32 = arith.constant 1 : i32
    %0 = arith.muli %arg0, %c1_i32 : i32
    %1 = arith.addi %0, %arg1 : i32
    %c0_i32 = arith.constant 0 : i32
    %c0_i32_0 = arith.constant 0 : i32
    return %1, %c0_i32 : i32, i32
  }
  func.func @transform_2(%arg0: i32, %arg1: i32) -> (i32, i32) {
    %c1_i32 = arith.constant 1 : i32
    %0 = arith.muli %arg0, %c1_i32 : i32
    %1 = arith.addi %0, %arg1 : i32
    %c0_i32 = arith.constant 0 : i32
    %c0_i32_0 = arith.constant 0 : i32
    return %1, %c0_i32 : i32, i32
  }
  func.func @transform_3(%arg0: i32, %arg1: i32) -> (i32, i32, i32) {
    %c0_i32 = arith.constant 0 : i32
    %c0_i32_0 = arith.constant 0 : i32
    %c0_i32_1 = arith.constant 0 : i32
    return %arg0, %c0_i32, %c0_i32_0 : i32, i32, i32
  }
}

</mosaic_0001>

<llo_original>
// kernel: tpu_custom_call.1
$region0: #{tpu_custom_call.1}
  #allocation0 [shape = 'u32[]', space=smem, size = 0x4, offset = 0x4, fixed_abs, tag = 'smem constant byte address 0x4 - core index']
  #allocation1 [shape = 'u32[72,128]{1,0:T(1,128)}', space=vmem, size = 0x9000, scoped, tag = 'internal scratch']
  #allocation2 [shape = 'f32[8,128]{1,0:T(8,128)}', space=vmem, size = 0x1000, scoped, tag = 'scratch operand']
  %s0 = inlined_call_operand.vmem [shape: f32[8,32], index: 0, kind: input, shape index: {}]
  %s1 = inlined_call_operand.hbm [shape: f32[8,32], index: 1, kind: input, shape index: {}]
  %s2 = inlined_call_operand.vmem [shape: s32[8,1], index: 2, kind: input, shape index: {}]
  %s3 = inlined_call_operand.hbm [shape: f32[1,8,128], index: 3, kind: output, shape index: {}]
  %s4 = sld [smem:[#allocation0]]
  $region34: #{tpu_custom_call.1} parent=0
    _
  %s6 = ssub.s32 1, %s4
  %s7 = scalar_select 0, %s6, %s4
  $region1: #{tpu_custom_call.1} parent=0
    #allocation3 [shape = 'u8[4096]{0}', space=vmem, size = 0x1000, scoped, tag = 'input window, operand 1, single buffered']
    #allocation4 [shape = 's32[1]{0}', space=sflag, size = 0x4, scoped, tag = 'scoped memory for tpu_custom_call.1']
    #allocation5 [shape = 's32[1]{0}', space=sflag, size = 0x4, scoped, tag = 'scoped memory for tpu_custom_call.1']
    #allocation6 [shape = 'u8[4096]{0}', space=vmem, size = 0x1000, scoped, tag = 'output window, operand 0, single buffered']
    %8 = vsyncpa [#allocation4], 0
    %9 = vsyncpa [#allocation5], 0
    // Predicated region
    $region2: #{tpu_custom_call.1} parent=1 // pred_check
      _
    $region3: #{tpu_custom_call.1} parent=1 // pred_check_branch
      %11 = sbr.rel (0) target = $region5
    $region4: #{tpu_custom_call.1} parent=1 // pred_region
      %s12 = sadd.s32 0, 0
      %p13 = scmp.lt.s32.totalorder %s12, 0
      %s14 = scalar_select %p13, %s12, 0
      %s15 = smul.addr %s14, 8
      %s16 = scalar_lea.vmem %s0, %s15
      %s17 = sadd.s32 0, 0
    $region5: #{tpu_custom_call.1} parent=1 // pred_fallthru
      _
    // Predicated region
    $region6: #{tpu_custom_call.1} parent=1 // pred_check
      _
    $region7: #{tpu_custom_call.1} parent=1 // pred_check_branch
      %19 = sbr.rel (0) target = $region9
    $region8: #{tpu_custom_call.1} parent=1 // pred_region
      %s20 = sadd.s32 0, 0
      %22 = vsyncadd [#allocation4], 0
      %s23 = smul.addr %s20, 8
      %s24 = scalar_lea.hbm %s1, %s23
      %s26 = sshll.u32 %s24, 4
      %s27 = int_to_ptr.hbm [resolvable:$true] %s26
      %s28 = sshll.u32 [#allocation3], 4
      %s29 = int_to_ptr.vmem [resolvable:$true] %s28
      %31 = dma.hbm_to_vmem [thread:$0]  %s27, 128, %s29, [#allocation4]
    $region9: #{tpu_custom_call.1} parent=1 // pred_fallthru
      _
    // Predicated region
    $region10: #{tpu_custom_call.1} parent=1 // pred_check
      _
    $region11: #{tpu_custom_call.1} parent=1 // pred_check_branch
      %33 = sbr.rel (0) target = $region13
    $region12: #{tpu_custom_call.1} parent=1 // pred_region
      %s34 = sadd.s32 0, 0
      %p35 = scmp.lt.s32.totalorder %s34, 0
      %s36 = scalar_select %p35, %s34, 0
      %s37 = smul.addr %s36, 8
      %s38 = scalar_lea.vmem %s2, %s37
      %s39 = sadd.s32 0, 0
    $region13: #{tpu_custom_call.1} parent=1 // pred_fallthru
      _
    // Predicated region
    $region14: #{tpu_custom_call.1} parent=1 // pred_check
      _
    $region15: #{tpu_custom_call.1} parent=1 // pred_check_branch
      %41 = sbr.rel (0) target = $region17
    $region16: #{tpu_custom_call.1} parent=1 // pred_region
      %43 = dma.done [#allocation4], 128
    $region17: #{tpu_custom_call.1} parent=1 // pred_fallthru
      _
    %s44 = sadd.s32 0, 0
    %p45 = scmp.lt.s32.totalorder %s44, 0
    %s46 = scalar_select %p45, %s44, 0
    %s47 = smul.addr %s46, 8
    %s48 = scalar_lea.vmem %s0, %s47
    %s49 = sadd.s32 0, 0
    %p50 = scmp.lt.s32.totalorder %s49, 0
    %s51 = scalar_select %p50, %s49, 0
    %s52 = smul.addr %s51, 8
    %s53 = scalar_lea.vmem %s2, %s52
    %s54 = sadd.s32 0, 0
    %p55 = scmp.lt.s32.totalorder %s54, 0
    %s56 = scalar_select %p55, %s54, 0
    %s57 = smul.addr %s56, 8
    %s58 = scalar_lea.vmem %s0, %s57
    %s59 = sadd.s32 0, 0
    %s60 = sadd.s32 0, 0
    %s61 = sadd.s32 0, 0
    %p62 = scmp.lt.s32.totalorder %s61, 0
    %s63 = scalar_select %p62, %s61, 0
    %s64 = smul.addr %s63, 8
    %s65 = scalar_lea.vmem %s2, %s64
    %s66 = sadd.s32 0, 0
    %p67 = scmp.eq.s32.totalorder 0, 0
    // Predicated region
    $region18: #{tpu_custom_call.1} parent=1 // pred_check
      %p68 = pneg %p67
    $region19: #{tpu_custom_call.1} parent=1 // pred_check_branch
      %70 = sbr.rel (%p68) target = $region21
    $region20: #{tpu_custom_call.1} parent=1 // pred_region
      %71 = vst [vmem:[#allocation2] sm:$0xff] 0.0
    $region21: #{tpu_custom_call.1} parent=1 // pred_fallthru
      _
    %v72 = vld [vmem:[%s58] sm:$0xff]
    %v73 = vld [vmem:[#allocation3] sm:$0xff]
    %v74 = vld [vmem:[%s65] sm:$0xff]
    %s75 = sadd.s32 0, 0
    %s76 = smul.u32 %s75, 8
    %v77 = vlaneseq
    %v78 = vshrl.u32 %v77, 7
    %v79 = vstv %s76
    %v80 = vadd.s32 %v79, %v78
    %vm81 = vcmp.lt.s32.totalorder %v80, 8
    %v82 = vsel %vm81, 1, 0
    %vm83 = vcmp.eq.s32.totalorder %v82, 1
    %v84 = vsel %vm83, %v72, 0.0
    %v85 = vsel %vm83, %v73, 0.0
    %v86 = vlaneseq
    %v87 = vand.u32 %v86, 127
    %88 = vset.pattern.permute.xlu0 0
    %89 = vperm.xlu0 %88, %v74
    %v90 = vpop.permute.xlu0 %89
    %vm91 = vcmp.eq.s32.totalorder %v87, %v90
    %v92 = vsel %vm91, %v84, 0.0
    %vm93 = vcmask 261120
    %v94 = vsel %vm93, %v92, 0.0
    %95 = vadd.xlane.f32.xlu0 %v94
    %v96 = vpop.xlane.xlu0 %95
    %v97 = vmul.f32 %v96, 0.9
    %v98 = vsel %vm93, %v84, 0.0
    %99 = vadd.xlane.f32.xlu0 %v98
    %v100 = vpop.xlane.xlu0 %99
    %v101 = vmul.f32 %v100, 0.003125
    %v102 = vadd.f32 %v97, %v101
    %v103 = vsub.f32 0.0, %v102
    %v104 = vsel %vm91, %v85, 0.0
    %v105 = vsel %vm93, %v104, 0.0
    %106 = vadd.xlane.f32.xlu0 %v105
    %v107 = vpop.xlane.xlu0 %106
    %v108 = vmul.f32 %v107, 0.9
    %v109 = vsel %vm93, %v85, 0.0
    %110 = vadd.xlane.f32.xlu0 %v109
    %v111 = vpop.xlane.xlu0 %110
    %v112 = vmul.f32 %v111, 0.003125
    %v113 = vadd.f32 %v108, %v112
    %v114 = vsub.f32 0.0, %v113
    %vm115 = vcmp.ne.s32.totalorder %v74, 0
    %vm116 = vmand %vm115, %vm81
    %v117 = vsel %vm116, 1, 0
    %v118 = vcvt.s32.f32 %v117
    %v119 = vmul.f32 %v103, %v118
    %vm120 = vcmask 7168
    %v121 = vsel %vm120, %v119, 0.0
    %122 = vadd.xlane.f32.xlu0 %v121
    %v123 = vpop.xlane.xlu0 %122
    %v124 = vrot.slane %v123, 4
    %v125 = vadd.f32 %v123, %v124
    %v126 = vrot.slane %v125, 2
    %v127 = vadd.f32 %v125, %v126
    %v128 = vrot.slane %v127, 1
    %v129 = vadd.f32 %v127, %v128
    %s130 = vtos %v129
    %v131 = vmul.f32 %v114, %v118
    %v132 = vsel %vm120, %v131, 0.0
    %133 = vadd.xlane.f32.xlu0 %v132
    %v134 = vpop.xlane.xlu0 %133
    %v135 = vrot.slane %v134, 4
    %v136 = vadd.f32 %v134, %v135
    %v137 = vrot.slane %v136, 2
    %v138 = vadd.f32 %v136, %v137
    %v139 = vrot.slane %v138, 1
    %v140 = vadd.f32 %v138, %v139
    %s141 = vtos %v140
    %v142 = vsel %vm120, %v118, 0.0
    %143 = vadd.xlane.f32.xlu0 %v142
    %v144 = vpop.xlane.xlu0 %143
    %v145 = vrot.slane %v144, 4
    %v146 = vadd.f32 %v144, %v145
    %v147 = vrot.slane %v146, 2
    %v148 = vadd.f32 %v146, %v147
    %v149 = vrot.slane %v148, 1
    %v150 = vadd.f32 %v148, %v149
    %s151 = vtos %v150
    %v152 = vsel %vm93, %v84, -inf
    %153 = vmax.xlane.f32.xlu0 %v152
    %v154 = vpop.xlane.xlu0 %153
    %v155 = vsub.f32 %v84, %v154
    %v156 = vmul.f32 %v155, 1.442695
    %v157 = vpow.pop %v156
    %v158 = vsel %vm93, %v157, 0.0
    %159 = vadd.xlane.f32.xlu0 %v158
    %v160 = vpop.xlane.xlu0 %159
    %v161 = vrcp.pop %v160
    %v162 = vmul.f32 %v157, %v161
    %v163 = vlog2.pop %v160
    %v164 = vmul.f32 %v163, 0.6931472
    %v165 = vsub.f32 %v155, %v164
    %v166 = vsel %vm93, %v85, -inf
    %167 = vmax.xlane.f32.xlu0 %v166
    %v168 = vpop.xlane.xlu0 %167
    %v169 = vsub.f32 %v85, %v168
    %v170 = vmul.f32 %v169, 1.442695
    %v171 = vpow.pop %v170
    %v172 = vsel %vm93, %v171, 0.0
    %173 = vadd.xlane.f32.xlu0 %v172
    %v174 = vpop.xlane.xlu0 %173
    %v175 = vrcp.pop %v174
    %v176 = vmul.f32 %v171, %v175
    %v177 = vlog2.pop %v174
    %v178 = vmul.f32 %v177, 0.6931472
    %v179 = vsub.f32 %v169, %v178
    %v180 = vsub.f32 %v176, %v162
    %v181 = vsub.f32 %v179, %v165
    %v182 = vmul.f32 %v180, %v181
    %v183 = vsel %vm93, %v182, 0.0
    %184 = vadd.xlane.f32.xlu0 %v183
    %v185 = vpop.xlane.xlu0 %184
    %v186 = vrot.slane %v185, 4
    %v187 = vadd.f32 %v185, %v186
    %v188 = vrot.slane %v187, 2
    %v189 = vadd.f32 %v187, %v188
    %v190 = vrot.slane %v189, 1
    %v191 = vadd.f32 %v189, %v190
    %s192 = vtos %v191
    %vm193 = vcmp.eq.s32.totalorder %v87, 0
    %v194 = vstv %s130
    %v195 = vsel %vm193, %v194, 0.0
    %vm196 = vcmp.eq.s32.totalorder %v87, 1
    %v197 = vstv %s141
    %v198 = vsel %vm196, %v197, 0.0
    %v199 = vadd.f32 %v195, %v198
    %vm200 = vcmp.eq.s32.totalorder %v87, 2
    %v201 = vstv %s151
    %v202 = vsel %vm200, %v201, 0.0
    %v203 = vadd.f32 %v199, %v202
    %vm204 = vcmp.eq.s32.totalorder %v87, 3
    %v205 = vstv %s192
    %v206 = vsel %vm204, %v205, 0.0
    %v207 = vadd.f32 %v203, %v206
    %v208 = vld [vmem:[#allocation2] sm:$0xff]
    %v209 = vadd.f32 %v208, %v207
    %210 = vst [vmem:[#allocation2] sm:$0xff] %v209
    // Predicated region
    $region22: #{tpu_custom_call.1} parent=1 // pred_check
      %p211 = pneg %p67
    $region23: #{tpu_custom_call.1} parent=1 // pred_check_branch
      %213 = sbr.rel (%p211) target = $region25
    $region24: #{tpu_custom_call.1} parent=1 // pred_region
      %v214 = vld [vmem:[#allocation2] sm:$0xff]
      %215 = vst [vmem:[#allocation6] sm:$0xff] %v214
    $region25: #{tpu_custom_call.1} parent=1 // pred_fallthru
      _
    // Predicated region
    $region26: #{tpu_custom_call.1} parent=1 // pred_check
      _
    $region27: #{tpu_custom_call.1} parent=1 // pred_check_branch
      %217 = sbr.rel (0) target = $region29
    $region28: #{tpu_custom_call.1} parent=1 // pred_region
      %219 = vsyncadd [#allocation5], 0
      %s221 = sshll.u32 [#allocation6], 4
      %s222 = int_to_ptr.vmem [resolvable:$true] %s221
      %s223 = sshll.u32 %s3, 4
      %s224 = int_to_ptr.hbm [resolvable:$true] %s223
      %226 = dma.vmem_to_hbm [thread:$0]  %s222, 128, %s224, [#allocation5]
    $region29: #{tpu_custom_call.1} parent=1 // pred_fallthru
      _
    // Predicated region
    $region30: #{tpu_custom_call.1} parent=1 // pred_check
      _
    $region31: #{tpu_custom_call.1} parent=1 // pred_check_branch
      %228 = sbr.rel (0) target = $region33
    $region32: #{tpu_custom_call.1} parent=1 // pred_region
      %230 = dma.done [#allocation5], 128
    $region33: #{tpu_custom_call.1} parent=1 // pred_fallthru
      _
    %231 = vsyncpa [#allocation4], 1
    %232 = vsyncpa [#allocation5], 1

</llo_original>
